<compile_context>
chip_gen: v7x
topology: tpu7x:2x2x1
jax: 0.10.0
libtpu: 0.0.40
codegen_flags: <defaults>
</compile_context>

<pallas_src>
import jax
import jax.numpy as jnp
import numpy as np
from jax.experimental import pallas as pl
from jax.experimental.pallas import tpu as pltpu

IN_DIM = 236
HID_DIM = 128
OUT_DIM = 30
N_PAD = 128            # lane-dense padded output width
MAX_TB = 4096          # max batch-tile rows
TARGET_GRID_STEPS = 4  # keep >=4 grid steps when batch allows (v7x has 2 TCs)
VMEM_LIMIT_BYTES = 40 * 1024 * 1024  # covers tb=4096 double-buffering on all gens


def _round_up(x, m):
    return (x + m - 1) // m * m


def _cdiv(a, b):
    return (a + b - 1) // b


def net_kernel(x_ref, w1_ref, b1_ref, w2_ref, b2_ref, o_ref):
    # x arrives as f32 straight from HBM; cast to bf16 in-register for the MXU.
    x = x_ref[...].astype(jnp.bfloat16)
    # fc1 (K=236 handled directly by Mosaic), f32 accumulation + f32 bias.
    h32 = jnp.dot(x, w1_ref[...], preferred_element_type=jnp.float32) + b1_ref[...]
    # tanh in bf16 (bf16 EUP path on v6e/v7x); this is also the bf16 operand the
    # second MXU pass needs, so the separate cast is gone.
    h = jnp.tanh(h32.astype(jnp.bfloat16))
    # Dropout(0.3) is identity at inference (module.eval()).
    # TODO(synk): training-mode dropout (Bernoulli mask via pltpu.prng_*) not emitted.
    logits = (
        jnp.dot(h, w2_ref[...], preferred_element_type=jnp.float32) + b2_ref[...]
    )
    # softmax over the lane-dense 128-wide padded feature axis; pad lanes carry a
    # -1e30 bias so their exp underflows to 0 and the denominator stays exact.
    m = jnp.max(logits, axis=-1, keepdims=True)
    e = jnp.exp(logits - m)
    inv = pl.reciprocal(jnp.sum(e, axis=-1, keepdims=True), approx=True)
    o_ref[...] = (e * inv).astype(o_ref.dtype)


def net_forward(x, w1, b1, w2, b2, *, max_tb=MAX_TB):
    """x: (B, 236) f32. w1: (236, 128), b1: (1, 128), w2: (128, 30), b2: (1, 30)."""
    B = x.shape[0]

    # Pad batch only to a sublane multiple (<= 7 dead rows); never up to tb.
    b_pad = _round_up(max(B, 1), 8)
    if b_pad != B:
        x = jnp.pad(x, ((0, b_pad - B), (0, 0)))

    # Batch tile: as large as allowed, but keep >= TARGET_GRID_STEPS grid steps
    # when the batch is big enough so the "parallel" axis shards across v7x's
    # two TensorCores. Partial final blocks are handled by the Pallas pipeline.
    tb = max(8, min(max_tb, _round_up(_cdiv(b_pad, TARGET_GRID_STEPS), 8)))
    grid = (_cdiv(b_pad, tb),)

    # Tiny one-time weight prep (resident in VMEM across the whole grid).
    w1_b = w1.astype(jnp.bfloat16)                                            # (236, 128)
    w2_b = jnp.pad(w2, ((0, 0), (0, N_PAD - OUT_DIM))).astype(jnp.bfloat16)   # (128, 128)
    b1_f = b1.reshape(1, HID_DIM).astype(jnp.float32)                         # (1, 128)
    b2_f = jnp.pad(
        b2.reshape(1, OUT_DIM).astype(jnp.float32),
        ((0, 0), (0, N_PAD - OUT_DIM)),
        constant_values=-1e30,
    )                                                                          # (1, 128)

    out = pl.pallas_call(
        net_kernel,
        out_shape=jax.ShapeDtypeStruct((b_pad, N_PAD), jnp.bfloat16),
        grid_spec=pltpu.PrefetchScalarGridSpec(
            num_scalar_prefetch=0,
            grid=grid,
            in_specs=[
                pl.BlockSpec((tb, IN_DIM), lambda i: (i, 0)),        # x tile (f32)
                pl.BlockSpec((IN_DIM, HID_DIM), lambda i: (0, 0)),   # w1 (resident)
                pl.BlockSpec((1, HID_DIM), lambda i: (0, 0)),        # b1 (resident)
                pl.BlockSpec((HID_DIM, N_PAD), lambda i: (0, 0)),    # w2 (resident)
                pl.BlockSpec((1, N_PAD), lambda i: (0, 0)),          # b2 (resident)
            ],
            out_specs=pl.BlockSpec((tb, N_PAD), lambda i: (i, 0)),
        ),
        compiler_params=pltpu.CompilerParams(
            dimension_semantics=("parallel",),
            vmem_limit_bytes=VMEM_LIMIT_BYTES,
        ),
    )(x, w1_b, b1_f, w2_b, b2_f)

    # Slice off batch/lane padding; return f32 probabilities like the reference.
    return out[:B, :OUT_DIM].astype(jnp.float32)


def init_params(key):
    """Deterministic parameter init mirroring the PyTorch module:
    xavier_normal_ weights, PyTorch-default uniform(-1/sqrt(fan_in), ...) biases."""
    k1, k2, k3, k4 = jax.random.split(key, 4)

    def xavier_normal(k, fan_in, fan_out):
        std = float(np.sqrt(2.0 / (fan_in + fan_out)))
        # stored as (in, out) == PyTorch weight transposed
        return std * jax.random.normal(k, (fan_in, fan_out), dtype=jnp.float32)

    def bias_uniform(k, fan_in, out):
        bound = 1.0 / float(np.sqrt(fan_in))
        return jax.random.uniform(
            k, (1, out), minval=-bound, maxval=bound, dtype=jnp.float32
        )

    w1 = xavier_normal(k1, IN_DIM, HID_DIM)
    b1 = bias_uniform(k2, IN_DIM, HID_DIM)
    w2 = xavier_normal(k3, HID_DIM, OUT_DIM)
    b2 = bias_uniform(k4, HID_DIM, OUT_DIM)
    return w1, b1, w2, b2


def reference_forward(x, w1, b1, w2, b2):
    h = jnp.tanh(x @ w1 + b1)
    logits = h @ w2 + b2
    return jax.nn.softmax(logits, axis=1)


if __name__ == "__main__":
    key = jax.random.PRNGKey(0)
    kx, kp = jax.random.split(key)

    B = 8
    x = jax.random.normal(kx, (B, IN_DIM), dtype=jnp.float32)
    w1, b1, w2, b2 = init_params(kp)

    out = jax.block_until_ready(net_forward(x, w1, b1, w2, b2))
    ref = reference_forward(x, w1, b1, w2, b2)

    assert out.shape == (B, OUT_DIM)
    assert bool(jnp.all(jnp.isfinite(out)))
    # bf16 output + approx reciprocal -> row sums within ~1e-2 of 1.
    assert jnp.allclose(jnp.sum(out, axis=1), 1.0, atol=1e-2)
    # bf16 matmul inputs/output + approx reciprocal vs f32 reference: loose tol.
    assert jnp.allclose(out, ref, atol=2e-2, rtol=2e-2)

    print("KERNEL_OK")
</pallas_src>

<mosaic_0001>
module attributes {stable_mosaic.version = 11 : i64} {
  func.func @net_kernel(%arg0: i32, %arg1: memref<8x236xf32, #tpu.memory_space<vmem>>, %arg2: memref<236x128xbf16, #tpu.memory_space<vmem>>, %arg3: memref<1x128xf32, #tpu.memory_space<vmem>>, %arg4: memref<128x128xbf16, #tpu.memory_space<vmem>>, %arg5: memref<1x128xf32, #tpu.memory_space<vmem>>, %arg6: memref<8x128xbf16, #tpu.memory_space<vmem>>) attributes {dimension_semantics = [#tpu.dimension_semantics<parallel>], iteration_bounds = array<i64: 1>, scalar_prefetch = 0 : i64, scratch_operands = 0 : i64, tpu.core_type = #tpu.core_type<tc>, window_params = [{transform_indices = @transform_0, window_bounds = array<i64: 8, 236>}, {pipeline_mode = #tpu.pipeline_mode<synchronous>, transform_indices = @transform_1, window_bounds = array<i64: 236, 128>}, {pipeline_mode = #tpu.pipeline_mode<synchronous>, transform_indices = @transform_2, window_bounds = array<i64: 1, 128>}, {pipeline_mode = #tpu.pipeline_mode<synchronous>, transform_indices = @transform_3, window_bounds = array<i64: 128, 128>}, {pipeline_mode = #tpu.pipeline_mode<synchronous>, transform_indices = @transform_4, window_bounds = array<i64: 1, 128>}, {transform_indices = @transform_5, window_bounds = array<i64: 8, 128>}]} {
    %c0 = arith.constant 0 : index
    %c0_0 = arith.constant 0 : index
    %0 = vector.load %arg1[%c0, %c0_0] : memref<8x236xf32, #tpu.memory_space<vmem>>, vector<8x236xf32>
    %1 = arith.truncf %0 : vector<8x236xf32> to vector<8x236xbf16>
    %c0_1 = arith.constant 0 : index
    %c0_2 = arith.constant 0 : index
    %2 = vector.load %arg2[%c0_1, %c0_2] : memref<236x128xbf16, #tpu.memory_space<vmem>>, vector<236x128xbf16>
    %cst = arith.constant dense<0.000000e+00> : vector<8x128xf32>
    %3 = tpu.matmul %1, %2, %cst {dimension_numbers = #tpu.dot_dimension_numbers<[1], [0], [0], [1], [0, 0, 1, 1], [], []>} : vector<8x236xbf16>, vector<236x128xbf16>, vector<8x128xf32> -> vector<8x128xf32>
    %c0_3 = arith.constant 0 : index
    %c0_4 = arith.constant 0 : index
    %4 = vector.load %arg3[%c0_3, %c0_4] : memref<1x128xf32, #tpu.memory_space<vmem>>, vector<1x128xf32>
    %5 = vector.broadcast %4 : vector<1x128xf32> to vector<8x128xf32>
    %6 = arith.addf %3, %5 : vector<8x128xf32>
    %7 = arith.truncf %6 : vector<8x128xf32> to vector<8x128xbf16>
    %8 = math.tanh %7 : vector<8x128xbf16>
    %c0_5 = arith.constant 0 : index
    %c0_6 = arith.constant 0 : index
    %9 = vector.load %arg4[%c0_5, %c0_6] : memref<128x128xbf16, #tpu.memory_space<vmem>>, vector<128x128xbf16>
    %cst_7 = arith.constant dense<0.000000e+00> : vector<8x128xf32>
    %10 = tpu.matmul %8, %9, %cst_7 {dimension_numbers = #tpu.dot_dimension_numbers<[1], [0], [0], [1], [0, 0, 1, 1], [], []>} : vector<8x128xbf16>, vector<128x128xbf16>, vector<8x128xf32> -> vector<8x128xf32>
    %c0_8 = arith.constant 0 : index
    %c0_9 = arith.constant 0 : index
    %11 = vector.load %arg5[%c0_8, %c0_9] : memref<1x128xf32, #tpu.memory_space<vmem>>, vector<1x128xf32>
    %12 = vector.broadcast %11 : vector<1x128xf32> to vector<8x128xf32>
    %13 = arith.addf %10, %12 : vector<8x128xf32>
    %cst_10 = arith.constant dense<0xFF800000> : vector<8xf32>
    %14 = vector.multi_reduction <maximumf>, %13, %cst_10 [1] : vector<8x128xf32> to vector<8xf32>
    %15 = vector.shape_cast %14 : vector<8xf32> to vector<8x1xf32>
    %16 = vector.broadcast %15 : vector<8x1xf32> to vector<8x128xf32>
    %17 = arith.subf %13, %16 : vector<8x128xf32>
    %18 = math.exp %17 : vector<8x128xf32>
    %cst_11 = arith.constant dense<0.000000e+00> : vector<8xf32>
    %19 = vector.multi_reduction <add>, %18, %cst_11 [1] : vector<8x128xf32> to vector<8xf32>
    %20 = vector.shape_cast %19 : vector<8xf32> to vector<8x1xf32>
    %21 = tpu.reciprocal %20 {approx = true} : vector<8x1xf32> -> vector<8x1xf32>
    %22 = vector.broadcast %21 : vector<8x1xf32> to vector<8x128xf32>
    %23 = arith.mulf %18, %22 : vector<8x128xf32>
    %24 = arith.truncf %23 : vector<8x128xf32> to vector<8x128xbf16>
    %c0_12 = arith.constant 0 : index
    %c0_13 = arith.constant 0 : index
    %25 = vector.load %arg6[%c0_12, %c0_13] : memref<8x128xbf16, #tpu.memory_space<vmem>>, vector<8x128xbf16>
    tpu.vector_store %arg6[%c0_12, %c0_13], %24 {strides = array<i32>} : memref<8x128xbf16, #tpu.memory_space<vmem>>, vector<8x128xbf16>,
    return
  }
  func.func @transform_0(%arg0: i32) -> (i32, i32) {
    %c0_i32 = arith.constant 0 : i32
    %c0_i32_0 = arith.constant 0 : i32
    return %arg0, %c0_i32 : i32, i32
  }
  func.func @transform_1(%arg0: i32) -> (i32, i32) {
    %c0_i32 = arith.constant 0 : i32
    %c0_i32_0 = arith.constant 0 : i32
    %c0_i32_1 = arith.constant 0 : i32
    return %c0_i32, %c0_i32_0 : i32, i32
  }
  func.func @transform_2(%arg0: i32) -> (i32, i32) {
    %c0_i32 = arith.constant 0 : i32
    %c0_i32_0 = arith.constant 0 : i32
    %c0_i32_1 = arith.constant 0 : i32
    return %c0_i32, %c0_i32_0 : i32, i32
  }
  func.func @transform_3(%arg0: i32) -> (i32, i32) {
    %c0_i32 = arith.constant 0 : i32
    %c0_i32_0 = arith.constant 0 : i32
    %c0_i32_1 = arith.constant 0 : i32
    return %c0_i32, %c0_i32_0 : i32, i32
  }
  func.func @transform_4(%arg0: i32) -> (i32, i32) {
    %c0_i32 = arith.constant 0 : i32
    %c0_i32_0 = arith.constant 0 : i32
    %c0_i32_1 = arith.constant 0 : i32
    return %c0_i32, %c0_i32_0 : i32, i32
  }
  func.func @transform_5(%arg0: i32) -> (i32, i32) {
    %c0_i32 = arith.constant 0 : i32
    %c0_i32_0 = arith.constant 0 : i32
    return %arg0, %c0_i32 : i32, i32
  }
}

</mosaic_0001>

<llo_original>
// kernel: tpu_custom_call.1
$region0: #{tpu_custom_call.1}
  #allocation0 [shape = 'u32[]', space=smem, size = 0x4, offset = 0x4, fixed_abs, tag = 'smem constant byte address 0x4 - core index']
  #allocation1 [shape = 'u32[144,128]{1,0:T(1,128)}', space=vmem, size = 0x12000, scoped, tag = 'internal scratch']
  %s0 = inlined_call_operand.hbm [shape: f32[8,236], index: 0, kind: input, shape index: {}]
  %s1 = inlined_call_operand.hbm [shape: bf16[236,128], index: 1, kind: input, shape index: {}]
  %s2 = inlined_call_operand.vmem [shape: f32[1,128], index: 2, kind: input, shape index: {}]
  %s3 = inlined_call_operand.hbm [shape: bf16[128,128], index: 3, kind: input, shape index: {}]
  %s4 = inlined_call_operand.vmem [shape: f32[1,128], index: 4, kind: input, shape index: {}]
  %s5 = inlined_call_operand.hbm [shape: bf16[8,128], index: 5, kind: output, shape index: {}]
  %s6 = sld [smem:[#allocation0]]
  $region42: #{tpu_custom_call.1} parent=0
    _
  %s8 = ssub.s32 1, %s6
  %s9 = scalar_select 0, %s8, %s6
  $region1: #{tpu_custom_call.1} parent=0
    #allocation2 [shape = 'u8[8192]{0}', space=vmem, size = 0x2000, scoped, tag = 'input window, operand 0, single buffered']
    #allocation3 [shape = 's32[1]{0}', space=sflag, size = 0x4, scoped, tag = 'scoped memory for tpu_custom_call.1']
    #allocation4 [shape = 's32[1]{0}', space=sflag, size = 0x4, scoped, tag = 'scoped memory for tpu_custom_call.1']
    #allocation5 [shape = 'u8[61440]{0}', space=vmem, size = 0xf000, scoped, tag = 'input window, operand 1, single buffered']
    #allocation6 [shape = 's32[1]{0}', space=sflag, size = 0x4, scoped, tag = 'scoped memory for tpu_custom_call.1']
    #allocation7 [shape = 'u8[32768]{0}', space=vmem, size = 0x8000, scoped, tag = 'input window, operand 3, single buffered']
    #allocation8 [shape = 'u8[2048]{0}', space=vmem, size = 0x800, scoped, tag = 'output window, operand 0, single buffered']
    %10 = vsyncpa [#allocation3], 0
    %11 = vsyncpa [#allocation6], 0
    %12 = vsyncpa [#allocation4], 0
    // Predicated region
    $region2: #{tpu_custom_call.1} parent=1 // pred_check
      _
    $region3: #{tpu_custom_call.1} parent=1 // pred_check_branch
      %14 = sbr.rel (0) target = $region5
    $region4: #{tpu_custom_call.1} parent=1 // pred_region
      %s16 = ssub.s32 256, 256
      %17 = vsyncadd [#allocation3], %s16
      %s19 = sshll.u32 [#allocation2], 4
      %s20 = int_to_ptr.vmem [resolvable:$true] %s19
      %22 = dma.hbm_to_vmem [thread:$0]  %s0, 256, %s20, [#allocation3]
    $region5: #{tpu_custom_call.1} parent=1 // pred_fallthru
      _
    // Predicated region
    $region6: #{tpu_custom_call.1} parent=1 // pred_check
      _
    $region7: #{tpu_custom_call.1} parent=1 // pred_check_branch
      %24 = sbr.rel (0) target = $region9
    $region8: #{tpu_custom_call.1} parent=1 // pred_region
      %s26 = ssub.s32 1920, 1920
      %27 = vsyncadd [#allocation6], %s26
      %s28 = sshll.u32 [#allocation5], 4
      %s29 = int_to_ptr.vmem [resolvable:$true] %s28
      %34 = dma.hbm_to_vmem [thread:$0]  %s1, 1920, %s29, [#allocation6], 64, 64, 4
    $region9: #{tpu_custom_call.1} parent=1 // pred_fallthru
      _
    // Predicated region
    $region10: #{tpu_custom_call.1} parent=1 // pred_check
      _
    $region11: #{tpu_custom_call.1} parent=1 // pred_check_branch
      %36 = sbr.rel (0) target = $region13
    $region12: #{tpu_custom_call.1} parent=1 // pred_region
      _
    $region13: #{tpu_custom_call.1} parent=1 // pred_fallthru
      _
    // Predicated region
    $region14: #{tpu_custom_call.1} parent=1 // pred_check
      _
    $region15: #{tpu_custom_call.1} parent=1 // pred_check_branch
      %38 = sbr.rel (0) target = $region17
    $region16: #{tpu_custom_call.1} parent=1 // pred_region
      %s40 = ssub.s32 1024, 1024
      %41 = vsyncadd [#allocation6], %s40
      %s42 = sshll.u32 [#allocation7], 4
      %s43 = int_to_ptr.vmem [resolvable:$true] %s42
      %48 = dma.hbm_to_vmem [thread:$0]  %s3, 1024, %s43, [#allocation6], 64, 64, 4
    $region17: #{tpu_custom_call.1} parent=1 // pred_fallthru
      _
    // Predicated region
    $region18: #{tpu_custom_call.1} parent=1 // pred_check
      _
    $region19: #{tpu_custom_call.1} parent=1 // pred_check_branch
      %50 = sbr.rel (0) target = $region21
    $region20: #{tpu_custom_call.1} parent=1 // pred_region
      _
    $region21: #{tpu_custom_call.1} parent=1 // pred_fallthru
      _
    // Predicated region
    $region22: #{tpu_custom_call.1} parent=1 // pred_check
      _
    $region23: #{tpu_custom_call.1} parent=1 // pred_check_branch
      %52 = sbr.rel (0) target = $region25
    $region24: #{tpu_custom_call.1} parent=1 // pred_region
      %53 = dma.done [#allocation3], 256
    $region25: #{tpu_custom_call.1} parent=1 // pred_fallthru
      _
    // Predicated region
    $region26: #{tpu_custom_call.1} parent=1 // pred_check
      _
    $region27: #{tpu_custom_call.1} parent=1 // pred_check_branch
      %55 = sbr.rel (0) target = $region29
    $region28: #{tpu_custom_call.1} parent=1 // pred_region
      %56 = dma.done [#allocation6], 1920
    $region29: #{tpu_custom_call.1} parent=1 // pred_fallthru
      _
    // Predicated region
    $region30: #{tpu_custom_call.1} parent=1 // pred_check
      _
    $region31: #{tpu_custom_call.1} parent=1 // pred_check_branch
      %58 = sbr.rel (0) target = $region33
    $region32: #{tpu_custom_call.1} parent=1 // pred_region
      %59 = dma.done [#allocation6], 1024
    $region33: #{tpu_custom_call.1} parent=1 // pred_fallthru
      _
    %v61 = vld [vmem:[#allocation2] sm:$0xff]
    %v62 = vld [vmem:[#allocation2 + $0x8] sm:$0xff]
    %v63 = vpack.c.bf16 %v61, %v61
    %v64 = vpack.c.bf16 %v62, %v62
    %v65 = vld [vmem:[#allocation5] sm:$0xf]
    %v66 = vld [vmem:[#allocation5 + $0x4] sm:$0xf]
    %v67 = vld [vmem:[#allocation5 + $0x8] sm:$0xf]
    %v68 = vld [vmem:[#allocation5 + $0xc] sm:$0xf]
    %v69 = vld [vmem:[#allocation5 + $0x10] sm:$0xf]
    %v70 = vld [vmem:[#allocation5 + $0x14] sm:$0xf]
    %v71 = vld [vmem:[#allocation5 + $0x18] sm:$0xf]
    %v72 = vld [vmem:[#allocation5 + $0x1c] sm:$0xf]
    %v73 = vld [vmem:[#allocation5 + $0x20] sm:$0xf]
    %v74 = vld [vmem:[#allocation5 + $0x24] sm:$0xf]
    %v75 = vld [vmem:[#allocation5 + $0x28] sm:$0xf]
    %v76 = vld [vmem:[#allocation5 + $0x2c] sm:$0xf]
    %v77 = vld [vmem:[#allocation5 + $0x30] sm:$0xf]
    %v78 = vld [vmem:[#allocation5 + $0x34] sm:$0xf]
    %v79 = vld [vmem:[#allocation5 + $0x38] sm:$0xf]
    %v80 = vld [vmem:[#allocation5 + $0x3c] sm:$0xf]
    %v81 = vld [vmem:[#allocation5 + $0x40] sm:$0xf]
    %v82 = vld [vmem:[#allocation5 + $0x44] sm:$0xf]
    %v83 = vld [vmem:[#allocation5 + $0x48] sm:$0xf]
    %v84 = vld [vmem:[#allocation5 + $0x4c] sm:$0xf]
    %v85 = vld [vmem:[#allocation5 + $0x50] sm:$0xf]
    %v86 = vld [vmem:[#allocation5 + $0x54] sm:$0xf]
    %v87 = vld [vmem:[#allocation5 + $0x58] sm:$0xf]
    %v88 = vld [vmem:[#allocation5 + $0x5c] sm:$0xf]
    %v89 = vld [vmem:[#allocation5 + $0x60] sm:$0xf]
    %v90 = vld [vmem:[#allocation5 + $0x64] sm:$0xf]
    %v91 = vld [vmem:[#allocation5 + $0x68] sm:$0xf]
    %v92 = vld [vmem:[#allocation5 + $0x6c] sm:$0xf]
    %v93 = vld [vmem:[#allocation5 + $0x70] sm:$0xf]
    %v94 = vld [vmem:[#allocation5 + $0x74] sm:$0x3]
    %v95 = vld [vmem:[%s2] sm:$0x1]
    %v97 = vlaneseq
    %v98 = vshrl.u32 %v97, 7
    %v99 = vsub.s32 0, %v98
    %v100 = vrot.slane %v95, %v99
    %v132 = vunpack.c.l.b16 %v65
    %v133 = vunpack.c.l.b16 %v66
    %v134 = vunpack.c.l.b16 %v67
    %v135 = vunpack.c.l.b16 %v68
    %v136 = vunpack.c.l.b16 %v69
    %v137 = vunpack.c.l.b16 %v70
    %v138 = vunpack.c.l.b16 %v71
    %v139 = vunpack.c.l.b16 %v72
    %v140 = vunpack.c.l.b16 %v73
    %v141 = vunpack.c.l.b16 %v74
    %v142 = vunpack.c.l.b16 %v75
    %v143 = vunpack.c.l.b16 %v76
    %v144 = vunpack.c.l.b16 %v77
    %v145 = vunpack.c.l.b16 %v78
    %v146 = vunpack.c.l.b16 %v79
    %v147 = vunpack.c.l.b16 %v80
    %v148 = vunpack.c.l.b16 %v81
    %v149 = vunpack.c.l.b16 %v82
    %v150 = vunpack.c.l.b16 %v83
    %v151 = vunpack.c.l.b16 %v84
    %v152 = vunpack.c.l.b16 %v85
    %v153 = vunpack.c.l.b16 %v86
    %v154 = vunpack.c.l.b16 %v87
    %v155 = vunpack.c.l.b16 %v88
    %v156 = vunpack.c.l.b16 %v89
    %v157 = vunpack.c.l.b16 %v90
    %v158 = vunpack.c.l.b16 %v91
    %v159 = vunpack.c.l.b16 %v92
    %v160 = vunpack.c.l.b16 %v93
    %v161 = vunpack.c.l.b16 %v94
    %v162 = vpack.c.b16 %v133, %v132
    %v163 = vpack.c.b16 %v135, %v134
    %v164 = vpack.c.b16 %v137, %v136
    %v165 = vpack.c.b16 %v139, %v138
    %v166 = vpack.c.b16 %v141, %v140
    %v167 = vpack.c.b16 %v143, %v142
    %v168 = vpack.c.b16 %v145, %v144
    %v169 = vpack.c.b16 %v147, %v146
    %v170 = vpack.c.b16 %v149, %v148
    %v171 = vpack.c.b16 %v151, %v150
    %v172 = vpack.c.b16 %v153, %v152
    %v173 = vpack.c.b16 %v155, %v154
    %v174 = vpack.c.b16 %v157, %v156
    %v175 = vpack.c.b16 %v159, %v158
    %v176 = vpack.c.b16 %v161, %v160
    %vm191 = vcmask 883712
    %v193 = vsel %vm191, %v64, 0
    %vm195 = vcmask 1045504
    %v197 = vsel %vm195, %v176, 0
    %199 = vmatprep.subr.bf16.mxu0 0
    %200 = vmatpush1.bf16.msra.mxu0 %v162
    %201 = vmatprep.subr.bf16.mxu0 0
    %202 = vmatpush1.bf16.msra.mxu0 %v163
    %203 = vmatprep.subr.bf16.mxu0 0
    %204 = vmatpush1.bf16.msra.mxu0 %v164
    %205 = vmatprep.subr.bf16.mxu0 0
    %206 = vmatpush1.bf16.msra.mxu0 %v165
    %207 = vmatprep.subr.bf16.mxu0 0
    %208 = vmatpush1.bf16.msra.mxu0 %v166
    %209 = vmatprep.subr.bf16.mxu0 0
    %210 = vmatpush1.bf16.msra.mxu0 %v167
    %211 = vmatprep.subr.bf16.mxu0 0
    %212 = vmatpush1.bf16.msra.mxu0 %v168
    %213 = vmatprep.subr.bf16.mxu0 0
    %214 = vmatpush1.bf16.msra.mxu0 %v169
    %215 = vmatprep.subr.bf16.mxu0 0
    %216 = vmatpush1.bf16.msra.mxu0 %v170
    %217 = vmatprep.subr.bf16.mxu0 0
    %218 = vmatpush1.bf16.msra.mxu0 %v171
    %219 = vmatprep.subr.bf16.mxu0 0
    %220 = vmatpush1.bf16.msra.mxu0 %v172
    %221 = vmatprep.subr.bf16.mxu0 0
    %222 = vmatpush1.bf16.msra.mxu0 %v173
    %223 = vmatprep.subr.bf16.mxu0 0
    %224 = vmatpush1.bf16.msra.mxu0 %v174
    %225 = vmatprep.subr.bf16.mxu0 0
    %226 = vmatpush1.bf16.msra.mxu0 %v175
    %227 = vmatprep.subr.bf16.mxu0 0
    %228 = vmatpush1.bf16.msra.mxu0 %v197
    %229 = vmatprep.subr.bf16.mxu0 0
    %230 = vmatpush1.bf16.msra.mxu0 0
    %231 = vmatprep.mubr.bf16.mxu0 %v193
    %232 = vmatmul.mubr.bf16.gmra.mrb[0].mxu0 %v63
    %v233 = vpop.f32.mrb[0].mxu0
    %v234 = vadd.f32 %v100, %v233
    %v235 = vpop.f32.mrb[0].mxu0
    %v236 = vpop.f32.mrb[0].mxu0
    %v237 = vpop.f32.mrb[0].mxu0
    %238 = vdwg.mxu0
    %v239 = vpack.c.bf16 %v234, %v234
    %v240 = vtanh.bf16.pop %v239
    %v241 = vld [vmem:[#allocation7] sm:$0xf]
    %v242 = vld [vmem:[#allocation7 + $0x4] sm:$0xf]
    %v243 = vld [vmem:[#allocation7 + $0x8] sm:$0xf]
    %v244 = vld [vmem:[#allocation7 + $0xc] sm:$0xf]
    %v245 = vld [vmem:[#allocation7 + $0x10] sm:$0xf]
    %v246 = vld [vmem:[#allocation7 + $0x14] sm:$0xf]
    %v247 = vld [vmem:[#allocation7 + $0x18] sm:$0xf]
    %v248 = vld [vmem:[#allocation7 + $0x1c] sm:$0xf]
    %v249 = vld [vmem:[#allocation7 + $0x20] sm:$0xf]
    %v250 = vld [vmem:[#allocation7 + $0x24] sm:$0xf]
    %v251 = vld [vmem:[#allocation7 + $0x28] sm:$0xf]
    %v252 = vld [vmem:[#allocation7 + $0x2c] sm:$0xf]
    %v253 = vld [vmem:[#allocation7 + $0x30] sm:$0xf]
    %v254 = vld [vmem:[#allocation7 + $0x34] sm:$0xf]
    %v255 = vld [vmem:[#allocation7 + $0x38] sm:$0xf]
    %v256 = vld [vmem:[#allocation7 + $0x3c] sm:$0xf]
    %v257 = vld [vmem:[%s4] sm:$0x1]
    %v259 = vlaneseq
    %v260 = vshrl.u32 %v259, 7
    %v261 = vsub.s32 0, %v260
    %v262 = vrot.slane %v257, %v261
    %v280 = vunpack.c.l.b16 %v241
    %v281 = vunpack.c.l.b16 %v242
    %v282 = vunpack.c.l.b16 %v243
    %v283 = vunpack.c.l.b16 %v244
    %v284 = vunpack.c.l.b16 %v245
    %v285 = vunpack.c.l.b16 %v246
    %v286 = vunpack.c.l.b16 %v247
    %v287 = vunpack.c.l.b16 %v248
    %v288 = vunpack.c.l.b16 %v249
    %v289 = vunpack.c.l.b16 %v250
    %v290 = vunpack.c.l.b16 %v251
    %v291 = vunpack.c.l.b16 %v252
    %v292 = vunpack.c.l.b16 %v253
    %v293 = vunpack.c.l.b16 %v254
    %v294 = vunpack.c.l.b16 %v255
    %v295 = vunpack.c.l.b16 %v256
    %v296 = vpack.c.b16 %v281, %v280
    %v297 = vpack.c.b16 %v283, %v282
    %v298 = vpack.c.b16 %v285, %v284
    %v299 = vpack.c.b16 %v287, %v286
    %v300 = vpack.c.b16 %v289, %v288
    %v301 = vpack.c.b16 %v291, %v290
    %v302 = vpack.c.b16 %v293, %v292
    %v303 = vpack.c.b16 %v295, %v294
    %312 = vmatprep.subr.bf16.mxu0 0
    %313 = vmatpush1.bf16.msra.mxu0 %v296
    %314 = vmatprep.subr.bf16.mxu0 0
    %315 = vmatpush1.bf16.msra.mxu0 %v297
    %316 = vmatprep.subr.bf16.mxu0 0
    %317 = vmatpush1.bf16.msra.mxu0 %v298
    %318 = vmatprep.subr.bf16.mxu0 0
    %319 = vmatpush1.bf16.msra.mxu0 %v299
    %320 = vmatprep.subr.bf16.mxu0 0
    %321 = vmatpush1.bf16.msra.mxu0 %v300
    %322 = vmatprep.subr.bf16.mxu0 0
    %323 = vmatpush1.bf16.msra.mxu0 %v301
    %324 = vmatprep.subr.bf16.mxu0 0
    %325 = vmatpush1.bf16.msra.mxu0 %v302
    %326 = vmatprep.subr.bf16.mxu0 0
    %327 = vmatpush1.bf16.msra.mxu0 %v303
    %328 = vmatprep.subr.bf16.mxu0 0
    %329 = vmatpush1.bf16.msra.mxu0 0
    %330 = vmatprep.subr.bf16.mxu0 0
    %331 = vmatpush1.bf16.msra.mxu0 0
    %332 = vmatprep.subr.bf16.mxu0 0
    %333 = vmatpush1.bf16.msra.mxu0 0
    %334 = vmatprep.subr.bf16.mxu0 0
    %335 = vmatpush1.bf16.msra.mxu0 0
    %336 = vmatprep.subr.bf16.mxu0 0
    %337 = vmatpush1.bf16.msra.mxu0 0
    %338 = vmatprep.subr.bf16.mxu0 0
    %339 = vmatpush1.bf16.msra.mxu0 0
    %340 = vmatprep.subr.bf16.mxu0 0
    %341 = vmatpush1.bf16.msra.mxu0 0
    %342 = vmatprep.subr.bf16.mxu0 0
    %343 = vmatpush1.bf16.msra.mxu0 0
    %344 = vmatprep.mubr.bf16.mxu0 0
    %345 = vmatmul.mubr.bf16.gmra.mrb[0].mxu0 %v240
    %v346 = vpop.f32.mrb[0].mxu0
    %v347 = vadd.f32 %v262, %v346
    %v348 = vpop.f32.mrb[0].mxu0
    %v349 = vpop.f32.mrb[0].mxu0
    %v350 = vpop.f32.mrb[0].mxu0
    %351 = vdwg.mxu0
    %352 = vmax.xlane.f32.xlu0 %v347
    %v353 = vpop.xlane.xlu0 %352
    %v354 = vsub.f32 %v347, %v353
    %v355 = vmul.f32 %v354, 1.442695
    %v356 = vpow.pop %v355
    %357 = vadd.xlane.f32.xlu0 %v356
    %v358 = vpop.xlane.xlu0 %357
    %v359 = vrcp.pop %v358
    %v360 = vmul.f32 %v356, %v359
    %v361 = vpack.c.bf16 %v360, %v360
    %362 = vst [vmem:[#allocation8] sm:$0xf] %v361
    // Predicated region
    $region34: #{tpu_custom_call.1} parent=1 // pred_check
      _
    $region35: #{tpu_custom_call.1} parent=1 // pred_check_branch
      %364 = sbr.rel (0) target = $region37
    $region36: #{tpu_custom_call.1} parent=1 // pred_region
      %s366 = ssub.s32 64, 64
      %367 = vsyncadd [#allocation4], %s366
      %s369 = sshll.u32 [#allocation8], 4
      %s370 = int_to_ptr.vmem [resolvable:$true] %s369
      %372 = dma.vmem_to_hbm [thread:$0]  %s370, 64, %s5, [#allocation4]
    $region37: #{tpu_custom_call.1} parent=1 // pred_fallthru
      _
    // Predicated region
    $region38: #{tpu_custom_call.1} parent=1 // pred_check
      _
    $region39: #{tpu_custom_call.1} parent=1 // pred_check_branch
      %374 = sbr.rel (0) target = $region41
    $region40: #{tpu_custom_call.1} parent=1 // pred_region
      %375 = dma.done [#allocation4], 64
    $region41: #{tpu_custom_call.1} parent=1 // pred_fallthru
      _
    %376 = vsyncpa [#allocation3], 1
    %377 = vsyncpa [#allocation6], 1
    %378 = vsyncpa [#allocation4], 1

</llo_original>
